<compile_context>
chip_gen: v7x
topology: tpu7x:2x2x1
jax: 0.10.0
libtpu: 0.0.40
codegen_flags: <defaults>
</compile_context>

<pallas_src>
import functools
import math

import jax
import jax.numpy as jnp
from jax import lax
from jax.experimental import pallas as pl
from jax.experimental.pallas import tpu as pltpu

_BN_EPS = 1e-5
_NEG_SLOPE = 0.2   # LeakyReLU slope used throughout the module
_LANE = 128
_SUBLANE = 8       # f32 sublane packing (bf16 inputs would need 16; inputs are f32)


# ------------------------------- Pallas kernels --------------------------------

def _sigmoid_kernel(x_ref, o_ref):
    o_ref[...] = jax.nn.sigmoid(x_ref[...])


def _affine_lrelu_kernel(x_ref, s_ref, t_ref, o_ref):
    # y = x * scale + shift (folded training-mode BatchNorm), then LeakyReLU(0.2).
    y = x_ref[...] * s_ref[...] + t_ref[...]
    o_ref[...] = jnp.where(y >= 0.0, y, _NEG_SLOPE * y)


def _linear_bias_kernel(x_ref, w_ref, b_ref, o_ref):
    o_ref[...] = (
        jnp.dot(x_ref[...], w_ref[...], preferred_element_type=jnp.float32)
        + b_ref[...]
    )


def _reparam_kernel(mu_ref, lv_ref, eps_ref, z_ref):
    z_ref[...] = mu_ref[...] + eps_ref[...] * jnp.exp(0.5 * lv_ref[...])


# ------------------------------ Pallas wrappers ---------------------------------

def _full_spec(shape):
    """Whole-array VMEM block for a grid=(1,) pallas_call."""
    nd = len(shape)
    return pl.BlockSpec(shape, lambda i: (0,) * nd)


def pallas_sigmoid(x: jax.Array) -> jax.Array:
    """Elementwise sigmoid on a lane-dense 2D slab, ~2 MiB blocks, cdiv grid."""
    n = x.size
    if n < _SUBLANE * _LANE:
        # Tiny activations: pallas_call fixed overhead dominates; use XLA (review).
        return jax.nn.sigmoid(x)
    width = None
    for w in (2048, 1024, 512, 256, 128):  # widest lane-dense width dividing n
        if n % w == 0:
            width = w
            break
    if width is None:
        # Awkward sizes: avoid pad + slice HBM round-trips entirely (review).
        return jax.nn.sigmoid(x)
    rows = n // width
    x2d = x.reshape(rows, width)
    itemsize = x.dtype.itemsize
    if rows <= _SUBLANE:
        tile_rows = rows                                   # single full block
    else:
        # ~2 MiB per block: amortizes ~0.35us/step overhead and stays within the
        # v5e 16 MiB default scoped-VMEM budget with double buffering (review).
        target = (2 * 1024 * 1024) // (width * itemsize)
        tile_rows = max(_SUBLANE, (min(rows, target) // _SUBLANE) * _SUBLANE)
    grid = (pl.cdiv(rows, tile_rows),)                     # partial last block is masked
    out2d = pl.pallas_call(
        _sigmoid_kernel,
        out_shape=jax.ShapeDtypeStruct((rows, width), x.dtype),
        grid=grid,
        in_specs=[pl.BlockSpec((tile_rows, width), lambda i: (i, 0))],
        out_specs=pl.BlockSpec((tile_rows, width), lambda i: (i, 0)),
        compiler_params=pltpu.CompilerParams(
            dimension_semantics=("parallel",)),            # megacore sharding on v7x
    )(x2d)
    return out2d.reshape(x.shape)


def pallas_batchnorm_leaky_relu(x, gamma, beta):
    """Training-mode BatchNorm2d (batch statistics) folded into a per-channel
    affine and fused with LeakyReLU(0.2) in one Pallas pass."""
    B, C, H, W = x.shape
    mean = jnp.mean(x, axis=(0, 2, 3))
    var = jnp.var(x, axis=(0, 2, 3))          # biased var, like PyTorch training BN
    scale = gamma * lax.rsqrt(var + _BN_EPS)
    shift = beta - mean * scale
    rows, width = B * C, H * W
    x2d = x.reshape(rows, width)
    s2d = jnp.broadcast_to(scale[None, :], (B, C)).reshape(rows, 1)
    t2d = jnp.broadcast_to(shift[None, :], (B, C)).reshape(rows, 1)
    out2d = pl.pallas_call(
        _affine_lrelu_kernel,
        out_shape=jax.ShapeDtypeStruct((rows, width), x.dtype),
        grid=(1,),                             # activations here are <= 0.5 MiB
        in_specs=[_full_spec((rows, width)),
                  _full_spec((rows, 1)),
                  _full_spec((rows, 1))],
        out_specs=_full_spec((rows, width)),
    )(x2d, s2d, t2d)
    return out2d.reshape(B, C, H, W)


def pallas_linear(x, w, b):
    """y = x @ w + b on the MXU (rows padded to the 8-sublane tile)."""
    B, K = x.shape
    N = w.shape[1]
    Bp = max(_SUBLANE, pl.cdiv(B, _SUBLANE) * _SUBLANE)
    xp = x if Bp == B else jnp.pad(x, ((0, Bp - B), (0, 0)))
    out = pl.pallas_call(
        _linear_bias_kernel,
        out_shape=jax.ShapeDtypeStruct((Bp, N), jnp.float32),
        grid=(1,),
        in_specs=[_full_spec((Bp, K)), _full_spec((K, N)), _full_spec((1, N))],
        out_specs=_full_spec((Bp, N)),
    )(xp, w, b.reshape(1, N))
    return out[:B]


def pallas_reparameterize(mu, log_var, eps):
    return pl.pallas_call(
        _reparam_kernel,
        out_shape=jax.ShapeDtypeStruct(mu.shape, mu.dtype),
        grid=(1,),
        in_specs=[_full_spec(mu.shape)] * 3,
        out_specs=_full_spec(mu.shape),
    )(mu, log_var, eps)


# --------------------------- convolutions (XLA helpers) --------------------------

# TODO(synk): strided Conv2d / ConvTranspose2d (and the bilinear F.interpolate
# resize branches) are dispatched to XLA; an im2col + Pallas-MXU-matmul version
# is not implemented.
def _conv2d(x, w, b, stride, padding):
    y = lax.conv_general_dilated(
        x, w, window_strides=(stride, stride),
        padding=((padding, padding), (padding, padding)),
        dimension_numbers=("NCHW", "OIHW", "NCHW"))
    return y + b[None, :, None, None]


def _conv_transpose2d(x, w_pt, b, stride, padding):
    # w_pt is in PyTorch ConvTranspose2d layout (in_ch, out_ch, kh, kw).
    k = w_pt.shape[2]
    w_conv = jnp.flip(w_pt, axis=(2, 3)).transpose(1, 0, 2, 3)   # -> OIHW
    pad = k - 1 - padding
    y = lax.conv_general_dilated(
        x, w_conv, window_strides=(1, 1),
        padding=((pad, pad), (pad, pad)),
        lhs_dilation=(stride, stride),
        dimension_numbers=("NCHW", "OIHW", "NCHW"))
    return y + b[None, :, None, None]


# --------------------------------- ColorVAE -------------------------------------

def init_colorvae_params(key, latent_dim=32, image_size=64):
    num_layers = int(math.log2(image_size)) - 2
    init_size = image_size // (2 ** num_layers)

    params = {"enc": [], "dec": []}
    cur = 3
    for i in range(num_layers):
        out = min(512, 64 * (2 ** i))
        key, kw = jax.random.split(key)
        params["enc"].append({
            "w": jax.random.normal(kw, (out, cur, 4, 4), jnp.float32)
                 * math.sqrt(2.0 / (cur * 16)),
            "b": jnp.zeros((out,), jnp.float32),
            "gamma": jnp.ones((out,), jnp.float32),
            "beta": jnp.zeros((out,), jnp.float32),
        })
        cur = out
    flatten_dim = cur * init_size * init_size

    key, k1, k2, k3 = jax.random.split(key, 4)
    params["fc_mu_w"] = (jax.random.normal(k1, (flatten_dim, latent_dim), jnp.float32)
                         / math.sqrt(flatten_dim))
    params["fc_mu_b"] = jnp.zeros((latent_dim,), jnp.float32)
    params["fc_var_w"] = (jax.random.normal(k2, (flatten_dim, latent_dim), jnp.float32)
                          / math.sqrt(flatten_dim))
    params["fc_var_b"] = jnp.zeros((latent_dim,), jnp.float32)
    params["dec_in_w"] = (jax.random.normal(k3, (latent_dim, flatten_dim), jnp.float32)
                          / math.sqrt(latent_dim))
    params["dec_in_b"] = jnp.zeros((flatten_dim,), jnp.float32)

    for i in range(num_layers):
        last = i == num_layers - 1
        in_ch = cur
        out_ch = 3 if last else min(512, 64 * (2 ** (num_layers - i - 2)))
        key, kw = jax.random.split(key)
        layer = {
            "wt": jax.random.normal(kw, (in_ch, out_ch, 4, 4), jnp.float32)
                  * math.sqrt(2.0 / (in_ch * 16)),
            "bt": jnp.zeros((out_ch,), jnp.float32),
        }
        if last:
            key, kc = jax.random.split(key)
            layer["wc"] = (jax.random.normal(kc, (out_ch, out_ch, 3, 3), jnp.float32)
                           * math.sqrt(2.0 / (out_ch * 9)))
            layer["bc"] = jnp.zeros((out_ch,), jnp.float32)
        else:
            layer["gamma"] = jnp.ones((out_ch,), jnp.float32)
            layer["beta"] = jnp.zeros((out_ch,), jnp.float32)
        params["dec"].append(layer)
        cur = out_ch

    meta = {"latent_dim": latent_dim, "image_size": image_size,
            "num_layers": num_layers, "initial_size": init_size,
            "flatten_dim": flatten_dim}
    return params, meta


def colorvae_forward(params, x, eps_noise, *, meta, use_pallas=True):
    """Functional equivalent of ColorVAE.forward (training-mode BatchNorm)."""
    num_layers = meta["num_layers"]
    init_size = meta["initial_size"]

    def bn_lrelu(h, gamma, beta):
        if use_pallas:
            return pallas_batchnorm_leaky_relu(h, gamma, beta)
        mean = jnp.mean(h, axis=(0, 2, 3), keepdims=True)
        var = jnp.var(h, axis=(0, 2, 3), keepdims=True)
        hn = (h - mean) * lax.rsqrt(var + _BN_EPS)
        hn = hn * gamma[None, :, None, None] + beta[None, :, None, None]
        return jnp.where(hn >= 0.0, hn, _NEG_SLOPE * hn)

    def linear(h, w, b):
        if use_pallas:
            return pallas_linear(h, w, b)
        return jnp.dot(h, w, precision=lax.Precision.HIGHEST) + b[None, :]

    # ---- encode ----
    h = x
    for layer in params["enc"]:
        h = _conv2d(h, layer["w"], layer["b"], stride=2, padding=1)
        h = bn_lrelu(h, layer["gamma"], layer["beta"])
    h = h.reshape(h.shape[0], -1)                      # nn.Flatten
    mu = linear(h, params["fc_mu_w"], params["fc_mu_b"])
    log_var = linear(h, params["fc_var_w"], params["fc_var_b"])

    # ---- reparameterize ----
    if use_pallas:
        z = pallas_reparameterize(mu, log_var, eps_noise)
    else:
        z = mu + eps_noise * jnp.exp(0.5 * log_var)

    # ---- decode ----
    d = linear(z, params["dec_in_w"], params["dec_in_b"])
    d = d.reshape(-1, 512, init_size, init_size)       # matches the PyTorch .view
    for i, layer in enumerate(params["dec"]):
        last = i == num_layers - 1
        d = _conv_transpose2d(d, layer["wt"], layer["bt"], stride=2, padding=1)
        if last:
            d = _conv2d(d, layer["wc"], layer["bc"], stride=1, padding=1)
            d = pallas_sigmoid(d) if use_pallas else jax.nn.sigmoid(d)
        else:
            d = bn_lrelu(d, layer["gamma"], layer["beta"])
    return d, mu, log_var


if __name__ == "__main__":
    IMAGE_SIZE = 64     # smallest size for which ColorVAE's hard-coded 512-channel
                        # decoder reshape is consistent
    LATENT_DIM = 32
    BATCH = 2

    root = jax.random.PRNGKey(0)
    kp, kx, ke, ku = jax.random.split(root, 4)
    params, meta = init_colorvae_params(kp, latent_dim=LATENT_DIM,
                                        image_size=IMAGE_SIZE)
    x = jax.random.normal(kx, (BATCH, 3, IMAGE_SIZE, IMAGE_SIZE), jnp.float32)
    eps_noise = jax.random.normal(ke, (BATCH, LATENT_DIM), jnp.float32)

    # Tight unit check of the elementwise Pallas sigmoid path.
    u = jax.random.normal(ku, (BATCH, 3, IMAGE_SIZE, IMAGE_SIZE), jnp.float32)
    su = jax.block_until_ready(jax.jit(pallas_sigmoid)(u))
    assert jnp.allclose(su, jax.nn.sigmoid(u), atol=1e-5, rtol=1e-5)

    # Pallas-backed forward (jitted once; kernels are module-level, no per-call lambdas).
    fwd = jax.jit(functools.partial(colorvae_forward, meta=meta, use_pallas=True))
    x_hat, mu, log_var = jax.block_until_ready(fwd(params, x, eps_noise))

    # Pure-JAX/XLA reference with the same params and noise.
    ref = jax.jit(functools.partial(colorvae_forward, meta=meta, use_pallas=False))
    x_ref, mu_ref, lv_ref = jax.block_until_ready(ref(params, x, eps_noise))

    assert x_hat.shape == (BATCH, 3, IMAGE_SIZE, IMAGE_SIZE)
    assert mu.shape == (BATCH, LATENT_DIM) and log_var.shape == (BATCH, LATENT_DIM)
    assert bool(jnp.all(jnp.isfinite(x_hat)))
    assert jnp.allclose(mu, mu_ref, atol=2e-2, rtol=2e-2)
    assert jnp.allclose(log_var, lv_ref, atol=2e-2, rtol=2e-2)
    assert jnp.allclose(x_hat, x_ref, atol=5e-2, rtol=5e-2)

    print("KERNEL_OK")
</pallas_src>

<mosaic_0001>
module attributes {stable_mosaic.version = 11 : i64} {
  func.func @_sigmoid_kernel(%arg0: i32, %arg1: memref<8x2048xf32, #tpu.memory_space<vmem>>, %arg2: memref<8x2048xf32, #tpu.memory_space<vmem>>) attributes {dimension_semantics = [#tpu.dimension_semantics<parallel>], iteration_bounds = array<i64: 2>, scalar_prefetch = 0 : i64, scratch_operands = 0 : i64, tpu.core_type = #tpu.core_type<tc>, window_params = [{transform_indices = @transform_0, window_bounds = array<i64: 8, 2048>}, {transform_indices = @transform_1, window_bounds = array<i64: 8, 2048>}]} {
    %c0 = arith.constant 0 : index
    %c0_0 = arith.constant 0 : index
    %0 = vector.load %arg1[%c0, %c0_0] : memref<8x2048xf32, #tpu.memory_space<vmem>>, vector<8x2048xf32>
    %1 = arith.negf %0 : vector<8x2048xf32>
    %2 = math.exp %1 : vector<8x2048xf32>
    %cst = arith.constant 1.000000e+00 : f32
    %3 = vector.broadcast %cst : f32 to vector<8x2048xf32>
    %4 = arith.addf %3, %2 : vector<8x2048xf32>
    %5 = arith.divf %3, %4 : vector<8x2048xf32>
    %c0_1 = arith.constant 0 : index
    %c0_2 = arith.constant 0 : index
    %6 = vector.load %arg2[%c0_1, %c0_2] : memref<8x2048xf32, #tpu.memory_space<vmem>>, vector<8x2048xf32>
    tpu.vector_store %arg2[%c0_1, %c0_2], %5 {strides = array<i32>} : memref<8x2048xf32, #tpu.memory_space<vmem>>, vector<8x2048xf32>,
    return
  }
  func.func @transform_0(%arg0: i32) -> (i32, i32) {
    %c0_i32 = arith.constant 0 : i32
    %c0_i32_0 = arith.constant 0 : i32
    return %arg0, %c0_i32 : i32, i32
  }
  func.func @transform_1(%arg0: i32) -> (i32, i32) {
    %c0_i32 = arith.constant 0 : i32
    %c0_i32_0 = arith.constant 0 : i32
    return %arg0, %c0_i32 : i32, i32
  }
}

</mosaic_0001>

<llo_original>
// kernel: pallas_sigmoid.1
$region0: #{pallas_sigmoid.1}
  #allocation0 [shape = 'u32[]', space=smem, size = 0x4, offset = 0x4, fixed_abs, tag = 'smem constant byte address 0x4 - core index']
  #allocation1 [shape = 'u32[144,128]{1,0:T(1,128)}', space=vmem, size = 0x12000, scoped, tag = 'internal scratch']
  %s0 = inlined_call_operand.vmem [shape: f32[12,2048], index: 0, kind: input, shape index: {}]
  %s1 = inlined_call_operand.vmem [shape: f32[12,2048], index: 1, kind: output, shape index: {}]
  %s2 = sld [smem:[#allocation0]]
  $region37: #{pallas_sigmoid.1} parent=0
    _
  %s4 = ssub.s32 1, %s2
  %s5 = scalar_select 0, %s4, %s2
  loop: start=0, step=1, limit=4
  $region2: #{pallas_sigmoid.1} parent=0 // loop_pre_header
    _
  $region3: #{pallas_sigmoid.1} parent=0 // loop_header
    %s7 = sphi 0, %s11
    %p8 = scmp.ge.s32.totalorder %s7, 4
    %s17 = sphi 0, %s19
    %s20 = sphi 0, %s17
    %s21 = sphi 0, %s20
    %s37 = sphi 0, %s21
    %s43 = sphi 0, %s45
    %s46 = sphi 0, %s43
    %s47 = sphi 0, %s46
    %s63 = sphi 0, %s47
  $region4: #{pallas_sigmoid.1} parent=0 // loop_header_branch
    %10 = sbr.rel (%p8) target = $region8
  $region5: #{pallas_sigmoid.1} parent=0 // loop_body
    %s12 = ssub.s32 %s7, 1
    %s13 = ssub.s32 %s7, 2
    %s14 = sadd.s32 %s7, 1
    %s15 = ssub.s32 %s7, %s14
    %p16 = scmp.eq.s32.totalorder %s15, 0
    %s18 = sadd.s32 %s17, 1
    %s19 = scalar_select %p16, %s17, %s18
    %p22 = pneg %p16
    %p23 = scmp.eq.s32.totalorder %s7, 1
    %p24 = por %p22, %p23
    %p25 = scmp.ne.s32.totalorder %s17, %s20
    %p26 = scmp.eq.s32.totalorder %s7, 0
    %p27 = por %p25, %p26
    %p28 = scmp.ne.s32.totalorder %s17, %s20
    %p29 = scmp.eq.s32.totalorder %s12, 1
    %p30 = por %p28, %p29
    %p31 = scmp.ne.s32.totalorder %s20, %s21
    %p32 = scmp.eq.s32.totalorder %s12, 0
    %p33 = por %p31, %p32
    %p34 = scmp.ne.s32.totalorder %s20, %s21
    %p35 = scmp.eq.s32.totalorder %s13, 1
    %p36 = por %p34, %p35
    %p38 = scmp.ne.s32.totalorder %s21, %s37
    %p39 = scmp.eq.s32.totalorder %s13, 0
    %p40 = por %p38, %p39
    %s41 = ssub.s32 %s7, %s14
    %p42 = scmp.eq.s32.totalorder %s41, 0
    %s44 = sadd.s32 %s43, 1
    %s45 = scalar_select %p42, %s43, %s44
    %p48 = pneg %p42
    %p49 = scmp.eq.s32.totalorder %s7, 1
    %p50 = por %p48, %p49
    %p51 = scmp.ne.s32.totalorder %s43, %s46
    %p52 = scmp.eq.s32.totalorder %s7, 0
    %p53 = por %p51, %p52
    %p54 = scmp.ne.s32.totalorder %s43, %s46
    %p55 = scmp.eq.s32.totalorder %s12, 1
    %p56 = por %p54, %p55
    %p57 = scmp.ne.s32.totalorder %s46, %s47
    %p58 = scmp.eq.s32.totalorder %s12, 0
    %p59 = por %p57, %p58
    %p60 = scmp.ne.s32.totalorder %s46, %s47
    %p61 = scmp.eq.s32.totalorder %s13, 1
    %p62 = por %p60, %p61
    %p64 = scmp.ne.s32.totalorder %s47, %s63
    %p65 = scmp.eq.s32.totalorder %s13, 0
    %p66 = por %p64, %p65
    %p67 = scmp.le.s32.totalorder 1, %s7
    %p68 = scmp.lt.s32.totalorder %s7, 3
    %p69 = pnand %p67, %p68
    %p70 = pneg %p69
    // Predicated region
    $region9: #{pallas_sigmoid.1} parent=5 // pred_check
      _
    $region10: #{pallas_sigmoid.1} parent=5 // pred_check_branch
      %72 = sbr.rel (%p69) target = $region12
    $region11: #{pallas_sigmoid.1} parent=5 // pred_region
      %s73 = ssub.s32 %s7, 1
    $region12: #{pallas_sigmoid.1} parent=5 // pred_fallthru
      _
    %p74 = scmp.lt.s32.totalorder %s7, 2
    // Predicated region
    $region13: #{pallas_sigmoid.1} parent=5 // pred_check
      %p75 = pneg %p74
    $region14: #{pallas_sigmoid.1} parent=5 // pred_check_branch
      %77 = sbr.rel (%p75) target = $region16
    $region15: #{pallas_sigmoid.1} parent=5 // pred_region
      // Predicated region
      $region17: #{pallas_sigmoid.1} parent=15 // pred_check
        %p78 = pneg %p27
      $region18: #{pallas_sigmoid.1} parent=15 // pred_check_branch
        %80 = sbr.rel (%p78) target = $region20
      $region19: #{pallas_sigmoid.1} parent=15 // pred_region
        %p81 = scmp.lt.s32.totalorder %s7, 1
        %s82 = scalar_select %p81, %s7, 1
        %s83 = smul.addr %s82, 16
        %s84 = smul.addr %s83, 8
        %s85 = scalar_lea.vmem %s0, %s84
      $region20: #{pallas_sigmoid.1} parent=15 // pred_fallthru
        _
    $region16: #{pallas_sigmoid.1} parent=5 // pred_fallthru
      _
    %p86 = scmp.le.s32.totalorder 1, %s7
    %p87 = scmp.lt.s32.totalorder %s7, 3
    %p88 = pnand %p86, %p87
    %p89 = pneg %p88
    // Predicated region
    $region21: #{pallas_sigmoid.1} parent=5 // pred_check
      _
    $region22: #{pallas_sigmoid.1} parent=5 // pred_check_branch
      %91 = sbr.rel (%p88) target = $region24
    $region23: #{pallas_sigmoid.1} parent=5 // pred_region
      %s92 = ssub.s32 %s7, 1
      %p93 = scmp.lt.s32.totalorder %s12, 1
      %s94 = scalar_select %p93, %s12, 1
      %s95 = smul.addr %s94, 16
      %s96 = smul.addr %s95, 8
      %s97 = scalar_lea.vmem %s0, %s96
      %p98 = pneg %p33
      %p99 = pneg %p30
      %p100 = pneg %p59
      %p101 = pneg %p56
      %p102 = scmp.lt.s32.totalorder %s12, 1
      %s103 = scalar_select %p102, %s12, 1
      %s104 = smul.addr %s103, 16
      %s105 = smul.addr %s104, 8
      %s106 = scalar_lea.vmem %s1, %s105
      %p107 = scmp.lt.s32.totalorder %s12, 1
      %s108 = scalar_select %p107, %s12, 1
      %s109 = smul.addr %s108, 16
      %s110 = smul.addr %s109, 8
      %s111 = scalar_lea.vmem %s0, %s110
      %p112 = scmp.lt.s32.totalorder %s12, 1
      %s113 = scalar_select %p112, %s12, 1
      %s114 = smul.addr %s113, 16
      %s115 = smul.addr %s114, 8
      %s116 = scalar_lea.vmem %s1, %s115
      %v117 = vld [vmem:[%s111] sm:$0xff]
      %v118 = vld [vmem:[%s111 + $0x8] sm:$0xff]
      %v119 = vld [vmem:[%s111 + $0x10] sm:$0xff]
      %v120 = vld [vmem:[%s111 + $0x18] sm:$0xff]
      %v121 = vld [vmem:[%s111 + $0x20] sm:$0xff]
      %v122 = vld [vmem:[%s111 + $0x28] sm:$0xff]
      %v123 = vld [vmem:[%s111 + $0x30] sm:$0xff]
      %v124 = vld [vmem:[%s111 + $0x38] sm:$0xff]
      %v125 = vld [vmem:[%s111 + $0x40] sm:$0xff]
      %v126 = vld [vmem:[%s111 + $0x48] sm:$0xff]
      %v127 = vld [vmem:[%s111 + $0x50] sm:$0xff]
      %v128 = vld [vmem:[%s111 + $0x58] sm:$0xff]
      %v129 = vld [vmem:[%s111 + $0x60] sm:$0xff]
      %v130 = vld [vmem:[%s111 + $0x68] sm:$0xff]
      %v131 = vld [vmem:[%s111 + $0x70] sm:$0xff]
      %v132 = vld [vmem:[%s111 + $0x78] sm:$0xff]
      %v133 = vxor.u32 %v117, 2147483648
      %v134 = vxor.u32 %v118, 2147483648
      %v135 = vxor.u32 %v119, 2147483648
      %v136 = vxor.u32 %v120, 2147483648
      %v137 = vxor.u32 %v121, 2147483648
      %v138 = vxor.u32 %v122, 2147483648
      %v139 = vxor.u32 %v123, 2147483648
      %v140 = vxor.u32 %v124, 2147483648
      %v141 = vxor.u32 %v125, 2147483648
      %v142 = vxor.u32 %v126, 2147483648
      %v143 = vxor.u32 %v127, 2147483648
      %v144 = vxor.u32 %v128, 2147483648
      %v145 = vxor.u32 %v129, 2147483648
      %v146 = vxor.u32 %v130, 2147483648
      %v147 = vxor.u32 %v131, 2147483648
      %v148 = vxor.u32 %v132, 2147483648
      %v149 = vmul.f32 %v133, 1.442695
      %v150 = vpow.pop %v149
      %v151 = vmul.f32 %v134, 1.442695
      %v152 = vpow.pop %v151
      %v153 = vmul.f32 %v135, 1.442695
      %v154 = vpow.pop %v153
      %v155 = vmul.f32 %v136, 1.442695
      %v156 = vpow.pop %v155
      %v157 = vmul.f32 %v137, 1.442695
      %v158 = vpow.pop %v157
      %v159 = vmul.f32 %v138, 1.442695
      %v160 = vpow.pop %v159
      %v161 = vmul.f32 %v139, 1.442695
      %v162 = vpow.pop %v161
      %v163 = vmul.f32 %v140, 1.442695
      %v164 = vpow.pop %v163
      %v165 = vmul.f32 %v141, 1.442695
      %v166 = vpow.pop %v165
      %v167 = vmul.f32 %v142, 1.442695
      %v168 = vpow.pop %v167
      %v169 = vmul.f32 %v143, 1.442695
      %v170 = vpow.pop %v169
      %v171 = vmul.f32 %v144, 1.442695
      %v172 = vpow.pop %v171
      %v173 = vmul.f32 %v145, 1.442695
      %v174 = vpow.pop %v173
      %v175 = vmul.f32 %v146, 1.442695
      %v176 = vpow.pop %v175
      %v177 = vmul.f32 %v147, 1.442695
      %v178 = vpow.pop %v177
      %v179 = vmul.f32 %v148, 1.442695
      %v180 = vpow.pop %v179
      %v181 = vadd.f32 %v150, 1.0
      %v182 = vadd.f32 %v152, 1.0
      %v183 = vadd.f32 %v154, 1.0
      %v184 = vadd.f32 %v156, 1.0
      %v185 = vadd.f32 %v158, 1.0
      %v186 = vadd.f32 %v160, 1.0
      %v187 = vadd.f32 %v162, 1.0
      %v188 = vadd.f32 %v164, 1.0
      %v189 = vadd.f32 %v166, 1.0
      %v190 = vadd.f32 %v168, 1.0
      %v191 = vadd.f32 %v170, 1.0
      %v192 = vadd.f32 %v172, 1.0
      %v193 = vadd.f32 %v174, 1.0
      %v194 = vadd.f32 %v176, 1.0
      %v195 = vadd.f32 %v178, 1.0
      %v196 = vadd.f32 %v180, 1.0
      %v197 = vrcp.pop %v181
      %v198 = vmul.f32 1.0, %v197
      %v199 = vrcp.pop %v182
      %v200 = vmul.f32 1.0, %v199
      %v201 = vrcp.pop %v183
      %v202 = vmul.f32 1.0, %v201
      %v203 = vrcp.pop %v184
      %v204 = vmul.f32 1.0, %v203
      %v205 = vrcp.pop %v185
      %v206 = vmul.f32 1.0, %v205
      %v207 = vrcp.pop %v186
      %v208 = vmul.f32 1.0, %v207
      %v209 = vrcp.pop %v187
      %v210 = vmul.f32 1.0, %v209
      %v211 = vrcp.pop %v188
      %v212 = vmul.f32 1.0, %v211
      %v213 = vrcp.pop %v189
      %v214 = vmul.f32 1.0, %v213
      %v215 = vrcp.pop %v190
      %v216 = vmul.f32 1.0, %v215
      %v217 = vrcp.pop %v191
      %v218 = vmul.f32 1.0, %v217
      %v219 = vrcp.pop %v192
      %v220 = vmul.f32 1.0, %v219
      %v221 = vrcp.pop %v193
      %v222 = vmul.f32 1.0, %v221
      %v223 = vrcp.pop %v194
      %v224 = vmul.f32 1.0, %v223
      %v225 = vrcp.pop %v195
      %v226 = vmul.f32 1.0, %v225
      %v227 = vrcp.pop %v196
      %v228 = vmul.f32 1.0, %v227
      %229 = vst [vmem:[%s116] sm:$0xff] %v198
      %230 = vst [vmem:[%s116 + $0x8] sm:$0xff] %v200
      %231 = vst [vmem:[%s116 + $0x10] sm:$0xff] %v202
      %232 = vst [vmem:[%s116 + $0x18] sm:$0xff] %v204
      %233 = vst [vmem:[%s116 + $0x20] sm:$0xff] %v206
      %234 = vst [vmem:[%s116 + $0x28] sm:$0xff] %v208
      %235 = vst [vmem:[%s116 + $0x30] sm:$0xff] %v210
      %236 = vst [vmem:[%s116 + $0x38] sm:$0xff] %v212
      %237 = vst [vmem:[%s116 + $0x40] sm:$0xff] %v214
      %238 = vst [vmem:[%s116 + $0x48] sm:$0xff] %v216
      %239 = vst [vmem:[%s116 + $0x50] sm:$0xff] %v218
      %240 = vst [vmem:[%s116 + $0x58] sm:$0xff] %v220
      %241 = vst [vmem:[%s116 + $0x60] sm:$0xff] %v222
      %242 = vst [vmem:[%s116 + $0x68] sm:$0xff] %v224
      %243 = vst [vmem:[%s116 + $0x70] sm:$0xff] %v226
      %244 = vst [vmem:[%s116 + $0x78] sm:$0xff] %v228
      %p245 = scmp.lt.s32.totalorder %s12, 1
      %s246 = scalar_select %p245, %s12, 1
      %s247 = smul.addr %s246, 16
      %s248 = smul.addr %s247, 8
      %s249 = scalar_lea.vmem %s1, %s248
      // Predicated region
      $region25: #{pallas_sigmoid.1} parent=23 // pred_check
        %p250 = pneg %p56
      $region26: #{pallas_sigmoid.1} parent=23 // pred_check_branch
        %252 = sbr.rel (%p250) target = $region28
      $region27: #{pallas_sigmoid.1} parent=23 // pred_region
        _
      $region28: #{pallas_sigmoid.1} parent=23 // pred_fallthru
        _
    $region24: #{pallas_sigmoid.1} parent=5 // pred_fallthru
      _
    %p253 = scmp.le.s32.totalorder 2, %s7
    // Predicated region
    $region29: #{pallas_sigmoid.1} parent=5 // pred_check
      %p254 = pneg %p253
    $region30: #{pallas_sigmoid.1} parent=5 // pred_check_branch
      %256 = sbr.rel (%p254) target = $region32
    $region31: #{pallas_sigmoid.1} parent=5 // pred_region
      %s257 = ssub.s32 %s7, 2
      // Predicated region
      $region33: #{pallas_sigmoid.1} parent=31 // pred_check
        %p258 = pneg %p62
      $region34: #{pallas_sigmoid.1} parent=31 // pred_check_branch
        %260 = sbr.rel (%p258) target = $region36
      $region35: #{pallas_sigmoid.1} parent=31 // pred_region
        %p261 = scmp.lt.s32.totalorder %s13, 1
        %s262 = scalar_select %p261, %s13, 1
        %s263 = smul.addr %s262, 16
        %s264 = smul.addr %s263, 8
        %s265 = scalar_lea.vmem %s1, %s264
      $region36: #{pallas_sigmoid.1} parent=31 // pred_fallthru
        _
    $region32: #{pallas_sigmoid.1} parent=5 // pred_fallthru
      _
  $region6: #{pallas_sigmoid.1} parent=0 // loop_footer
    %s11 = sadd.s32 1, %s7
  $region7: #{pallas_sigmoid.1} parent=0 // loop_footer_branch
    %6 = sbr.rel target = $region3
  $region8: #{pallas_sigmoid.1} parent=0 // loop_exit
    _

</llo_original>
